<compile_context>
chip_gen: v6e
topology: v6e:2x2x1
jax: 0.10.0
libtpu: 0.0.40
codegen_flags: <defaults>
</compile_context>

<pallas_src>
import jax
import jax.numpy as jnp
from jax.experimental import pallas as pl
from jax.experimental.pallas import tpu as pltpu

BN_EPS = 1e-5


def _cont_norm_kernel(x_ref, w_ref, b_ref, gamma_ref, beta_ref, o_ref):
    x = x_ref[...]                      # (B, F)
    w = w_ref[...]                      # (E_tile, F)  -- native PyTorch layout slice

    # Linear: y[b, e] = sum_f x[b, f] * w[e, f] + bias[e]
    # contract dim 1 of both operands -> no transposed copy of the weight.
    y = jax.lax.dot_general(
        x, w,
        dimension_numbers=(((1,), (1,)), ((), ())),
        preferred_element_type=jnp.float32,
    ) + b_ref[...]                      # (B, E_tile)

    # BatchNorm1d (training mode), one-pass stats over the batch axis.
    inv_b = 1.0 / y.shape[0]            # compile-time constant
    s1 = jnp.sum(y, axis=0, keepdims=True)          # (1, E_tile)
    s2 = jnp.sum(y * y, axis=0, keepdims=True)      # (1, E_tile)
    mean = s1 * inv_b
    # E[y^2] - mean^2 (clamped: guards tiny negative values from f32 rounding).
    var = jnp.maximum(s2 * inv_b - mean * mean, 0.0)
    inv_std = jax.lax.rsqrt(var + BN_EPS)           # EUP, effectively free

    # Fold BN affine into a single per-feature scale/shift.
    scale = gamma_ref[...] * inv_std                # (1, E_tile)
    shift = beta_ref[...] - mean * scale            # (1, E_tile)

    o_ref[...] = (y * scale + shift).astype(o_ref.dtype)


def continuous_normalization(x_cont, weight, bias, gamma, beta, *, tile_e=None):
    """x_cont: (B, F) f32; weight: (E, F) (PyTorch layout); bias/gamma/beta: (E,)."""
    B, F = x_cont.shape
    E = weight.shape[0]

    # Pick a lane-dense E tile (multiple of 128) when E allows it; otherwise a
    # single full-E block (small-E fallback, still correct).
    if tile_e is None:
        tile_e = next((t for t in (512, 256, 128) if E % t == 0), E)
    assert E % tile_e == 0

    b2 = bias.reshape(1, E)
    g2 = gamma.reshape(1, E)
    be2 = beta.reshape(1, E)

    grid = (E // tile_e,)

    return pl.pallas_call(
        _cont_norm_kernel,
        out_shape=jax.ShapeDtypeStruct((B, E), jnp.float32),
        grid_spec=pltpu.PrefetchScalarGridSpec(
            num_scalar_prefetch=0,
            grid=grid,
            in_specs=[
                pl.BlockSpec((B, F), lambda i: (0, 0)),        # full batch resident
                pl.BlockSpec((tile_e, F), lambda i: (i, 0)),   # weight E-slice
                pl.BlockSpec((1, tile_e), lambda i: (0, i)),   # bias
                pl.BlockSpec((1, tile_e), lambda i: (0, i)),   # gamma
                pl.BlockSpec((1, tile_e), lambda i: (0, i)),   # beta
            ],
            out_specs=pl.BlockSpec((B, tile_e), lambda i: (0, i)),
        ),
        compiler_params=pltpu.CompilerParams(
            # E-tiles are fully independent (per-feature BN stats): parallel.
            dimension_semantics=("parallel",)),
    )(x_cont, weight, b2, g2, be2)


def _reference(x_cont, weight, bias, gamma, beta):
    y = x_cont @ weight.T + bias
    mean = jnp.mean(y, axis=0, keepdims=True)
    var = jnp.mean((y - mean) ** 2, axis=0, keepdims=True)
    return (y - mean) / jnp.sqrt(var + BN_EPS) * gamma + beta


if __name__ == "__main__":
    key = jax.random.PRNGKey(0)

    # Case 1: small shapes matching the module's toy usage (single E block).
    batch, num_cont_features, embed_dim = 8, 16, 32
    kx, kw, kb = jax.random.split(key, 3)
    x_cont = jax.random.normal(kx, (batch, num_cont_features), dtype=jnp.float32)
    bound = 1.0 / (num_cont_features ** 0.5)
    weight = jax.random.uniform(kw, (embed_dim, num_cont_features),
                                minval=-bound, maxval=bound, dtype=jnp.float32)
    bias = jax.random.uniform(kb, (embed_dim,),
                              minval=-bound, maxval=bound, dtype=jnp.float32)
    gamma = jnp.ones((embed_dim,), dtype=jnp.float32)
    beta = jnp.zeros((embed_dim,), dtype=jnp.float32)

    out = jax.block_until_ready(
        continuous_normalization(x_cont, weight, bias, gamma, beta))
    ref = _reference(x_cont, weight, bias, gamma, beta)
    assert out.shape == (batch, embed_dim)
    assert jnp.allclose(out, ref, atol=1e-4, rtol=1e-4), "mismatch vs reference (small)"

    # Case 2: larger embed dim exercising the tiled, lane-dense "parallel" path.
    batch2, f2, e2 = 64, 16, 256
    kx2, kw2, kb2, kg2, kbeta2 = jax.random.split(jax.random.PRNGKey(1), 5)
    x2 = jax.random.normal(kx2, (batch2, f2), dtype=jnp.float32)
    bound2 = 1.0 / (f2 ** 0.5)
    w2 = jax.random.uniform(kw2, (e2, f2), minval=-bound2, maxval=bound2,
                            dtype=jnp.float32)
    bvec2 = jax.random.uniform(kb2, (e2,), minval=-bound2, maxval=bound2,
                               dtype=jnp.float32)
    g2 = 1.0 + 0.1 * jax.random.normal(kg2, (e2,), dtype=jnp.float32)
    beta2 = 0.1 * jax.random.normal(kbeta2, (e2,), dtype=jnp.float32)

    out2 = jax.block_until_ready(
        continuous_normalization(x2, w2, bvec2, g2, beta2))
    ref2 = _reference(x2, w2, bvec2, g2, beta2)
    assert out2.shape == (batch2, e2)
    assert jnp.allclose(out2, ref2, atol=1e-4, rtol=1e-4), "mismatch vs reference (tiled)"

    print("KERNEL_OK")
</pallas_src>

<mosaic_0001>
module attributes {stable_mosaic.version = 11 : i64} {
  func.func @_cont_norm_kernel(%arg0: i32, %arg1: memref<8x16xf32, #tpu.memory_space<vmem>>, %arg2: memref<32x16xf32, #tpu.memory_space<vmem>>, %arg3: memref<1x32xf32, #tpu.memory_space<vmem>>, %arg4: memref<1x32xf32, #tpu.memory_space<vmem>>, %arg5: memref<1x32xf32, #tpu.memory_space<vmem>>, %arg6: memref<8x32xf32, #tpu.memory_space<vmem>>) attributes {dimension_semantics = [#tpu.dimension_semantics<parallel>], iteration_bounds = array<i64: 1>, scalar_prefetch = 0 : i64, scratch_operands = 0 : i64, tpu.core_type = #tpu.core_type<tc>, window_params = [{pipeline_mode = #tpu.pipeline_mode<synchronous>, transform_indices = @transform_0, window_bounds = array<i64: 8, 16>}, {transform_indices = @transform_1, window_bounds = array<i64: 32, 16>}, {transform_indices = @transform_2, window_bounds = array<i64: 1, 32>}, {transform_indices = @transform_3, window_bounds = array<i64: 1, 32>}, {transform_indices = @transform_4, window_bounds = array<i64: 1, 32>}, {transform_indices = @transform_5, window_bounds = array<i64: 8, 32>}]} {
    %c0 = arith.constant 0 : index
    %c0_0 = arith.constant 0 : index
    %0 = vector.load %arg1[%c0, %c0_0] : memref<8x16xf32, #tpu.memory_space<vmem>>, vector<8x16xf32>
    %c0_1 = arith.constant 0 : index
    %c0_2 = arith.constant 0 : index
    %1 = vector.load %arg2[%c0_1, %c0_2] : memref<32x16xf32, #tpu.memory_space<vmem>>, vector<32x16xf32>
    %cst = arith.constant dense<0.000000e+00> : vector<8x32xf32>
    %2 = tpu.matmul %0, %1, %cst {dimension_numbers = #tpu.dot_dimension_numbers<[1], [1], [0], [0], [0, 0, 1, 0], [], []>} : vector<8x16xf32>, vector<32x16xf32>, vector<8x32xf32> -> vector<8x32xf32>
    %c0_3 = arith.constant 0 : index
    %c0_4 = arith.constant 0 : index
    %3 = vector.load %arg3[%c0_3, %c0_4] : memref<1x32xf32, #tpu.memory_space<vmem>>, vector<1x32xf32>
    %4 = vector.broadcast %3 : vector<1x32xf32> to vector<8x32xf32>
    %5 = arith.addf %2, %4 : vector<8x32xf32>
    %cst_5 = arith.constant dense<0.000000e+00> : vector<32xf32>
    %6 = vector.multi_reduction <add>, %5, %cst_5 [0] : vector<8x32xf32> to vector<32xf32>
    %7 = vector.shape_cast %6 : vector<32xf32> to vector<1x32xf32>
    %8 = arith.mulf %5, %5 : vector<8x32xf32>
    %cst_6 = arith.constant dense<0.000000e+00> : vector<32xf32>
    %9 = vector.multi_reduction <add>, %8, %cst_6 [0] : vector<8x32xf32> to vector<32xf32>
    %10 = vector.shape_cast %9 : vector<32xf32> to vector<1x32xf32>
    %cst_7 = arith.constant 1.250000e-01 : f32
    %11 = vector.broadcast %cst_7 : f32 to vector<1x32xf32>
    %12 = arith.mulf %7, %11 : vector<1x32xf32>
    %cst_8 = arith.constant 1.250000e-01 : f32
    %13 = vector.broadcast %cst_8 : f32 to vector<1x32xf32>
    %14 = arith.mulf %10, %13 : vector<1x32xf32>
    %15 = arith.mulf %12, %12 : vector<1x32xf32>
    %16 = arith.subf %14, %15 : vector<1x32xf32>
    %cst_9 = arith.constant 0.000000e+00 : f32
    %17 = vector.broadcast %cst_9 : f32 to vector<1x32xf32>
    %18 = arith.maximumf %16, %17 : vector<1x32xf32>
    %cst_10 = arith.constant 9.99999974E-6 : f32
    %19 = vector.broadcast %cst_10 : f32 to vector<1x32xf32>
    %20 = arith.addf %18, %19 : vector<1x32xf32>
    %21 = math.rsqrt %20 : vector<1x32xf32>
    %c0_11 = arith.constant 0 : index
    %c0_12 = arith.constant 0 : index
    %22 = vector.load %arg4[%c0_11, %c0_12] : memref<1x32xf32, #tpu.memory_space<vmem>>, vector<1x32xf32>
    %23 = arith.mulf %22, %21 : vector<1x32xf32>
    %c0_13 = arith.constant 0 : index
    %c0_14 = arith.constant 0 : index
    %24 = vector.load %arg5[%c0_13, %c0_14] : memref<1x32xf32, #tpu.memory_space<vmem>>, vector<1x32xf32>
    %25 = arith.mulf %12, %23 : vector<1x32xf32>
    %26 = arith.subf %24, %25 : vector<1x32xf32>
    %27 = vector.broadcast %23 : vector<1x32xf32> to vector<8x32xf32>
    %28 = arith.mulf %5, %27 : vector<8x32xf32>
    %29 = vector.broadcast %26 : vector<1x32xf32> to vector<8x32xf32>
    %30 = arith.addf %28, %29 : vector<8x32xf32>
    %c0_15 = arith.constant 0 : index
    %c0_16 = arith.constant 0 : index
    %31 = vector.load %arg6[%c0_15, %c0_16] : memref<8x32xf32, #tpu.memory_space<vmem>>, vector<8x32xf32>
    tpu.vector_store %arg6[%c0_15, %c0_16], %30 {strides = array<i32>} : memref<8x32xf32, #tpu.memory_space<vmem>>, vector<8x32xf32>,
    return
  }
  func.func @transform_0(%arg0: i32) -> (i32, i32) {
    %c0_i32 = arith.constant 0 : i32
    %c0_i32_0 = arith.constant 0 : i32
    %c0_i32_1 = arith.constant 0 : i32
    return %c0_i32, %c0_i32_0 : i32, i32
  }
  func.func @transform_1(%arg0: i32) -> (i32, i32) {
    %c0_i32 = arith.constant 0 : i32
    %c0_i32_0 = arith.constant 0 : i32
    return %arg0, %c0_i32 : i32, i32
  }
  func.func @transform_2(%arg0: i32) -> (i32, i32) {
    %c0_i32 = arith.constant 0 : i32
    %c0_i32_0 = arith.constant 0 : i32
    return %c0_i32, %arg0 : i32, i32
  }
  func.func @transform_3(%arg0: i32) -> (i32, i32) {
    %c0_i32 = arith.constant 0 : i32
    %c0_i32_0 = arith.constant 0 : i32
    return %c0_i32, %arg0 : i32, i32
  }
  func.func @transform_4(%arg0: i32) -> (i32, i32) {
    %c0_i32 = arith.constant 0 : i32
    %c0_i32_0 = arith.constant 0 : i32
    return %c0_i32, %arg0 : i32, i32
  }
  func.func @transform_5(%arg0: i32) -> (i32, i32) {
    %c0_i32 = arith.constant 0 : i32
    %c0_i32_0 = arith.constant 0 : i32
    return %c0_i32, %arg0 : i32, i32
  }
}

</mosaic_0001>

<llo_original>
// kernel: tpu_custom_call.1
$region0: #{tpu_custom_call.1}
  #allocation0 [shape = 'u32[]', space=smem, size = 0x4, offset = 0x4, fixed_abs, tag = 'smem constant byte address 0x4 - core index']
  #allocation1 [shape = 'u32[144,128]{1,0:T(1,128)}', space=vmem, size = 0x12000, scoped, tag = 'internal scratch']
  %s0 = inlined_call_operand.vmem [shape: f32[8,16], index: 0, kind: input, shape index: {}]
  %s1 = inlined_call_operand.vmem [shape: f32[32,16], index: 1, kind: input, shape index: {}]
  %s2 = inlined_call_operand.vmem [shape: f32[1,32], index: 2, kind: input, shape index: {}]
  %s3 = inlined_call_operand.vmem [shape: f32[1,32], index: 3, kind: input, shape index: {}]
  %s4 = inlined_call_operand.vmem [shape: f32[1,32], index: 4, kind: input, shape index: {}]
  %s5 = inlined_call_operand.hbm [shape: f32[8,32], index: 5, kind: output, shape index: {}]
  %s6 = sld [smem:[#allocation0]]
  $region30: #{tpu_custom_call.1} parent=0
    _
  %s8 = ssub.s32 1, %s6
  %s9 = scalar_select 0, %s8, %s6
  $region1: #{tpu_custom_call.1} parent=0
    #allocation2 [shape = 'u8[4096]{0}', space=vmem, size = 0x1000, scoped, tag = 'output window, operand 0, single buffered']
    #allocation3 [shape = 's32[1]{0}', space=sflag, size = 0x4, scoped, tag = 'scoped memory for tpu_custom_call.1']
    %10 = vsyncpa [#allocation3], 0
    // Predicated region
    $region2: #{tpu_custom_call.1} parent=1 // pred_check
      _
    $region3: #{tpu_custom_call.1} parent=1 // pred_check_branch
      %12 = sbr.rel (0) target = $region5
    $region4: #{tpu_custom_call.1} parent=1 // pred_region
      _
    $region5: #{tpu_custom_call.1} parent=1 // pred_fallthru
      _
    // Predicated region
    $region6: #{tpu_custom_call.1} parent=1 // pred_check
      _
    $region7: #{tpu_custom_call.1} parent=1 // pred_check_branch
      %14 = sbr.rel (0) target = $region9
    $region8: #{tpu_custom_call.1} parent=1 // pred_region
      _
    $region9: #{tpu_custom_call.1} parent=1 // pred_fallthru
      _
    // Predicated region
    $region10: #{tpu_custom_call.1} parent=1 // pred_check
      _
    $region11: #{tpu_custom_call.1} parent=1 // pred_check_branch
      %16 = sbr.rel (0) target = $region13
    $region12: #{tpu_custom_call.1} parent=1 // pred_region
      _
    $region13: #{tpu_custom_call.1} parent=1 // pred_fallthru
      _
    // Predicated region
    $region14: #{tpu_custom_call.1} parent=1 // pred_check
      _
    $region15: #{tpu_custom_call.1} parent=1 // pred_check_branch
      %18 = sbr.rel (0) target = $region17
    $region16: #{tpu_custom_call.1} parent=1 // pred_region
      _
    $region17: #{tpu_custom_call.1} parent=1 // pred_fallthru
      _
    // Predicated region
    $region18: #{tpu_custom_call.1} parent=1 // pred_check
      _
    $region19: #{tpu_custom_call.1} parent=1 // pred_check_branch
      %20 = sbr.rel (0) target = $region21
    $region20: #{tpu_custom_call.1} parent=1 // pred_region
      _
    $region21: #{tpu_custom_call.1} parent=1 // pred_fallthru
      _
    %v21 = vld [vmem:[%s0] sm:$0xff]
    %v22 = vld [vmem:[%s1] sm:$0xff]
    %v23 = vld [vmem:[%s1 + $0x8] sm:$0xff]
    %v24 = vld [vmem:[%s1 + $0x10] sm:$0xff]
    %v25 = vld [vmem:[%s1 + $0x18] sm:$0xff]
    %v26 = vld [vmem:[%s2] sm:$0x1]
    %v28 = vlaneseq
    %v29 = vshrl.u32 %v28, 7
    %v30 = vsub.s32 0, %v29
    %v31 = vrot.slane %v26, %v30
    %vm33 = vcmask 130048
    %v35 = vsel %vm33, %v21, 0
    %v38 = vsel %vm33, %v22, 0
    %v41 = vsel %vm33, %v23, 0
    %v44 = vsel %vm33, %v24, 0
    %v47 = vsel %vm33, %v25, 0
    %49 = vmatprep.subr.mxu0 0.0
    %50 = vmatpush1.xpose.msra.mxu0 0.0
    %51 = vmatprep.subr.mxu0 0.0
    %52 = vmatpush1.xpose.msra.mxu0 0.0
    %53 = vmatprep.subr.mxu0 0.0
    %54 = vmatpush1.xpose.msra.mxu0 0.0
    %55 = vmatprep.subr.mxu0 0.0
    %56 = vmatpush1.xpose.msra.mxu0 0.0
    %57 = vmatprep.subr.mxu0 0.0
    %58 = vmatpush1.xpose.msra.mxu0 0.0
    %59 = vmatprep.subr.mxu0 0.0
    %60 = vmatpush1.xpose.msra.mxu0 0.0
    %61 = vmatprep.subr.mxu0 0.0
    %62 = vmatpush1.xpose.msra.mxu0 0.0
    %63 = vmatprep.subr.mxu0 0.0
    %64 = vmatpush1.xpose.msra.mxu0 0.0
    %65 = vmatprep.subr.mxu0 0.0
    %66 = vmatpush1.xpose.msra.mxu0 0.0
    %67 = vmatprep.subr.mxu0 0.0
    %68 = vmatpush1.xpose.msra.mxu0 0.0
    %69 = vmatprep.subr.mxu0 0.0
    %70 = vmatpush1.xpose.msra.mxu0 0.0
    %71 = vmatprep.subr.mxu0 0.0
    %72 = vmatpush1.xpose.msra.mxu0 0.0
    %73 = vmatprep.subr.mxu0 0.0
    %74 = vmatpush1.xpose.msra.mxu0 %v47
    %75 = vmatprep.subr.mxu0 0.0
    %76 = vmatpush1.xpose.msra.mxu0 %v44
    %77 = vmatprep.subr.mxu0 0.0
    %78 = vmatpush1.xpose.msra.mxu0 %v41
    %79 = vmatprep.subr.mxu0 0.0
    %80 = vmatpush1.xpose.msra.mxu0 %v38
    %81 = vmatprep.subr.mxu0 0.0
    %82 = vmatpush2.xpose.msra.mxu0 0.0
    %83 = vmatprep.subr.mxu0 0.0
    %84 = vmatpush2.xpose.msra.mxu0 0.0
    %85 = vmatprep.subr.mxu0 0.0
    %86 = vmatpush2.xpose.msra.mxu0 0.0
    %87 = vmatprep.subr.mxu0 0.0
    %88 = vmatpush2.xpose.msra.mxu0 0.0
    %89 = vmatprep.subr.mxu0 0.0
    %90 = vmatpush2.xpose.msra.mxu0 0.0
    %91 = vmatprep.subr.mxu0 0.0
    %92 = vmatpush2.xpose.msra.mxu0 0.0
    %93 = vmatprep.subr.mxu0 0.0
    %94 = vmatpush2.xpose.msra.mxu0 0.0
    %95 = vmatprep.subr.mxu0 0.0
    %96 = vmatpush2.xpose.msra.mxu0 0.0
    %97 = vmatprep.subr.mxu0 0.0
    %98 = vmatpush2.xpose.msra.mxu0 0.0
    %99 = vmatprep.subr.mxu0 0.0
    %100 = vmatpush2.xpose.msra.mxu0 0.0
    %101 = vmatprep.subr.mxu0 0.0
    %102 = vmatpush2.xpose.msra.mxu0 0.0
    %103 = vmatprep.subr.mxu0 0.0
    %104 = vmatpush2.xpose.msra.mxu0 0.0
    %105 = vmatprep.subr.mxu0 0.0
    %106 = vmatpush2.xpose.msra.mxu0 0.0
    %107 = vmatprep.subr.mxu0 0.0
    %108 = vmatpush2.xpose.msra.mxu0 0.0
    %109 = vmatprep.subr.mxu0 0.0
    %110 = vmatpush2.xpose.msra.mxu0 0.0
    %111 = vmatprep.subr.mxu0 0.0
    %112 = vmatpush2.xpose.msra.mxu0 0.0
    %113 = vmatprep.mubr.f32.mxu0 0.0
    %114 = vmatmul.mubr.f32.gmra.mxu0 %v35
    %v115 = vpop.f32.mrf.mxu0
    %v116 = vadd.f32 %v31, %v115
    %v117 = vpop.f32.mrf.mxu0
    %118 = vdwg.mxu0
    %vm119 = vcmask 261120
    %v120 = vsel %vm119, %v116, 0.0
    %v121 = vrot.slane %v120, 4
    %v122 = vadd.f32 %v120, %v121
    %v123 = vrot.slane %v122, 2
    %v124 = vadd.f32 %v122, %v123
    %v125 = vrot.slane %v124, 1
    %v126 = vadd.f32 %v124, %v125
    %v127 = vmul.f32 %v116, %v116
    %v128 = vsel %vm119, %v127, 0.0
    %v129 = vrot.slane %v128, 4
    %v130 = vadd.f32 %v128, %v129
    %v131 = vrot.slane %v130, 2
    %v132 = vadd.f32 %v130, %v131
    %v133 = vrot.slane %v132, 1
    %v134 = vadd.f32 %v132, %v133
    %v135 = vmul.f32 %v126, 0.125
    %v136 = vmul.f32 %v134, 0.125
    %v137 = vmul.f32 %v135, %v135
    %v138 = vsub.f32 %v136, %v137
    %v139 = vmax.f32 %v138, 0.0
    %v140 = vadd.f32 %v139, 1e-05
    %v141 = vrsqrt.pop %v140
    %v142 = vld [vmem:[%s3] sm:$0x1]
    %v143 = vmul.f32 %v142, %v141
    %v144 = vld [vmem:[%s4] sm:$0x1]
    %v145 = vmul.f32 %v135, %v143
    %v146 = vsub.f32 %v144, %v145
    %v148 = vlaneseq
    %v149 = vshrl.u32 %v148, 7
    %v150 = vsub.s32 0, %v149
    %v151 = vrot.slane %v143, %v150
    %v153 = vmul.f32 %v116, %v151
    %v155 = vlaneseq
    %v156 = vshrl.u32 %v155, 7
    %v157 = vsub.s32 0, %v156
    %v158 = vrot.slane %v146, %v157
    %v160 = vadd.f32 %v153, %v158
    %161 = vst.msk [vmem:[#allocation2] sm:$0xff] %vm119, %v160
    // Predicated region
    $region22: #{tpu_custom_call.1} parent=1 // pred_check
      _
    $region23: #{tpu_custom_call.1} parent=1 // pred_check_branch
      %163 = sbr.rel (0) target = $region25
    $region24: #{tpu_custom_call.1} parent=1 // pred_region
      %s165 = ssub.s32 128, 128
      %166 = vsyncadd [#allocation3], %s165
      %s168 = sshll.u32 [#allocation2], 4
      %s169 = int_to_ptr.vmem [resolvable:$true] %s168
      %171 = dma.vmem_to_hbm [thread:$0]  %s169, 128, %s5, [#allocation3]
    $region25: #{tpu_custom_call.1} parent=1 // pred_fallthru
      _
    // Predicated region
    $region26: #{tpu_custom_call.1} parent=1 // pred_check
      _
    $region27: #{tpu_custom_call.1} parent=1 // pred_check_branch
      %173 = sbr.rel (0) target = $region29
    $region28: #{tpu_custom_call.1} parent=1 // pred_region
      %174 = dma.done [#allocation3], 128
    $region29: #{tpu_custom_call.1} parent=1 // pred_fallthru
      _
    %175 = vsyncpa [#allocation3], 1

</llo_original>
